<compile_context>
chip_gen: v5e
topology: v5e:2x2
jax: 0.10.0
libtpu: 0.0.40
codegen_flags: <defaults>
</compile_context>

<pallas_src>
import jax
import jax.numpy as jnp
from jax import lax
from jax.experimental import pallas as pl
from jax.experimental.pallas import tpu as pltpu

# ----- model hyperparameters (small, deterministic) -----
BATCH = 2
SEQ = 8
DIM = 32
NUM_HEADS = 4
DIM_HEAD = 8
HD = NUM_HEADS * DIM_HEAD        # 32
ATTN_STEP = 0.25
MLP_STEP = 0.25
LASSO_LAMBD = 0.05
SCALE = DIM_HEAD ** (-0.5)
LN_EPS = 1e-5
INV_ONE_PLUS_ATTN = 1.0 / (1.0 + ATTN_STEP)

# row offsets inside the packed constants tile
_W_UTT_ROW = 0                   # W_UT^T  (D, HD)
_W_UT_ROW = DIM                  # W_UT    (HD, D)
_W_EFF_ROW = 2 * DIM             # W - W^T W (D, D)
_LN_ROW = 3 * DIM                # gamma_attn, beta_attn, gamma_mlp, beta_mlp
_CONST_ROWS = 3 * DIM + 8        # padded to a sublane multiple


def _layernorm(v, g, b):
    mu = jnp.mean(v, axis=-1, keepdims=True)
    var = jnp.mean((v - mu) ** 2, axis=-1, keepdims=True)
    return (v - mu) * lax.rsqrt(var + LN_EPS) * g + b


def crate_encode_kernel(x_ref, c_ref, o_ref, tmp_ref):
    # ---- packed constants (one DMA) ----
    w_utT = c_ref[_W_UTT_ROW:_W_UTT_ROW + DIM, :]        # (D, HD)
    w_ut = c_ref[_W_UT_ROW:_W_UT_ROW + DIM, :]           # (HD, D)
    w_eff = c_ref[_W_EFF_ROW:_W_EFF_ROW + DIM, :]        # (D, D)  = W - W^T W
    ga = c_ref[_LN_ROW + 0:_LN_ROW + 1, :]               # (1, D)
    ba = c_ref[_LN_ROW + 1:_LN_ROW + 2, :]
    gm = c_ref[_LN_ROW + 2:_LN_ROW + 3, :]
    bm = c_ref[_LN_ROW + 3:_LN_ROW + 4, :]

    x = x_ref[...]                                       # (B*N, D) slab

    # --- norm_attn on the whole slab ---
    z = _layernorm(x, ga, ba)

    # --- Attention_Encode ---
    # UT projection: single (B*N, D) x (D, HD) MXU matmul.
    zu = jnp.dot(z, w_utT, preferred_element_type=jnp.float32)    # (B*N, HD)

    # Head split via the VMEM scratch (static lane-offset reads):
    # ZTU batched over g = head * B + batch.
    tmp_ref[...] = zu
    heads = [
        tmp_ref[:, h * DIM_HEAD:(h + 1) * DIM_HEAD]
        .reshape(BATCH, SEQ, DIM_HEAD)
        for h in range(NUM_HEADS)
    ]
    ztu = jnp.concatenate(heads, axis=0)                 # (H*B, N, d)

    # Subspace self-attention, batched over (head, batch).
    s = jnp.einsum('gnd,gmd->gnm', ztu, ztu,
                   preferred_element_type=jnp.float32) * SCALE    # (G, N, N)
    s = s - jnp.max(s, axis=-1, keepdims=True)
    e = jnp.exp(s)
    attn = e * pl.reciprocal(jnp.sum(e, axis=-1, keepdims=True), approx=True)
    ssa = jnp.einsum('gnm,gmd->gnd', attn, ztu,
                     preferred_element_type=jnp.float32)          # (G, N, d)

    # Head merge back into lanes via the scratch (static lane-offset stores),
    # then one (B*N, HD) @ (HD, D) matmul whose contraction also performs the
    # cross-head sum of the MSSA output projection.
    for h in range(NUM_HEADS):
        tmp_ref[:, h * DIM_HEAD:(h + 1) * DIM_HEAD] = (
            ssa[h * BATCH:(h + 1) * BATCH].reshape(BATCH * SEQ, DIM_HEAD))
    mssa = jnp.dot(tmp_ref[...], w_ut,
                   preferred_element_type=jnp.float32)            # (B*N, D)

    # residual gradient step + norm_mlp
    z_half = (z + ATTN_STEP * mssa) * INV_ONE_PLUS_ATTN
    zhn = _layernorm(z_half, gm, bm)

    # --- MLP_Encode (fused ISTA step): x + step * x @ (W - W^T W) ---
    grad = jnp.dot(zhn, w_eff, preferred_element_type=jnp.float32)
    grad_step = zhn + MLP_STEP * grad
    out = jnp.maximum(jnp.abs(grad_step) - MLP_STEP * LASSO_LAMBD, 0.0)

    # TODO(synk): output stays lane-sparse (D=32 of 128 lanes); a lane-dense
    # (B*N*D/128, 128) layout would need a lane-merging relayout of `out`,
    # which is skipped here to keep lowering on guaranteed-supported ops.
    o_ref[...] = out.astype(o_ref.dtype)


def crate_encode(x, w_ut, w_mlp, g_attn, b_attn, g_mlp, b_mlp):
    B, N, D = x.shape
    # wrapper-side (static) weight transforms -- done once by XLA, not per call
    w_eff = w_mlp - jnp.matmul(w_mlp.T, w_mlp)                    # W - W^T W
    ln_rows = jnp.stack([g_attn, b_attn, g_mlp, b_mlp]
                        + [jnp.zeros_like(g_attn)] * 4)           # (8, D) padded
    consts = jnp.concatenate([w_ut.T, w_ut, w_eff, ln_rows], axis=0)  # (3D+8, D)
    x2d = x.reshape(B * N, D)

    out2d = pl.pallas_call(
        crate_encode_kernel,
        out_shape=jax.ShapeDtypeStruct((B * N, D), x.dtype),
        grid_spec=pltpu.PrefetchScalarGridSpec(
            num_scalar_prefetch=0,
            grid=(1,),
            in_specs=[
                pl.BlockSpec((B * N, D), lambda i: (0, 0)),            # x slab
                pl.BlockSpec((_CONST_ROWS, D), lambda i: (0, 0)),      # consts
            ],
            out_specs=pl.BlockSpec((B * N, D), lambda i: (0, 0)),
            scratch_shapes=[pltpu.VMEM((B * N, HD), jnp.float32)],
        ),
        compiler_params=pltpu.CompilerParams(
            dimension_semantics=("arbitrary",)),
    )(x2d, consts)
    return out2d.reshape(B, N, D)


# ----- pure-JAX reference for verification -----
def crate_encode_ref(x, w_ut, w_mlp, g_attn, b_attn, g_mlp, b_mlp):
    def ln(v, g, b):
        mu = jnp.mean(v, axis=-1, keepdims=True)
        var = jnp.mean((v - mu) ** 2, axis=-1, keepdims=True)
        return (v - mu) / jnp.sqrt(var + LN_EPS) * g + b

    z = ln(x, g_attn, b_attn)                                     # (B,N,D)
    zu = jnp.einsum('bnd,hd->bnh', z, w_ut)                       # (B,N,HD)
    B, N, _ = zu.shape
    zu_h = zu.reshape(B, N, NUM_HEADS, DIM_HEAD).transpose(0, 2, 1, 3)
    scores = jnp.einsum('bhnd,bhmd->bhnm', zu_h, zu_h) * SCALE
    attn = jax.nn.softmax(scores, axis=-1)
    ssa = jnp.einsum('bhnm,bhmd->bhnd', attn, zu_h)
    ssa = ssa.transpose(0, 2, 1, 3).reshape(B, N, HD)
    mssa = jnp.einsum('bnh,hd->bnd', ssa, w_ut)
    z_half = (z + ATTN_STEP * mssa) / (1.0 + ATTN_STEP)
    zhn = ln(z_half, g_mlp, b_mlp)
    zd_t = zhn @ w_mlp.T
    zd_td = zd_t @ w_mlp
    zd = zhn @ w_mlp
    grad_step = zhn + MLP_STEP * (zd - zd_td)
    return jnp.maximum(jnp.abs(grad_step) - MLP_STEP * LASSO_LAMBD, 0.0)


if __name__ == "__main__":
    key = jax.random.PRNGKey(0)
    kx, ku, km = jax.random.split(key, 3)

    x = jax.random.normal(kx, (BATCH, SEQ, DIM), dtype=jnp.float32)

    # deterministic parameter init (synthetic; mimics small-scale random init)
    w_ut = jax.random.uniform(ku, (HD, DIM), dtype=jnp.float32,
                              minval=-1.0, maxval=1.0) * (DIM ** -0.5)
    w_mlp = jax.random.uniform(km, (DIM, DIM), dtype=jnp.float32,
                               minval=-1.0, maxval=1.0) * ((6.0 / DIM) ** 0.5)
    # LayerNorm defaults: gamma=1, beta=0
    g_attn = jnp.ones((DIM,), jnp.float32)
    b_attn = jnp.zeros((DIM,), jnp.float32)
    g_mlp = jnp.ones((DIM,), jnp.float32)
    b_mlp = jnp.zeros((DIM,), jnp.float32)

    out = crate_encode(x, w_ut, w_mlp, g_attn, b_attn, g_mlp, b_mlp)
    out = jax.block_until_ready(out)

    ref = crate_encode_ref(x, w_ut, w_mlp, g_attn, b_attn, g_mlp, b_mlp)
    assert out.shape == (BATCH, SEQ, DIM)
    # Tolerance accounts for the EUP approx reciprocal in the softmax
    # denominator and the W - W^T W summation-order change.
    err = jnp.max(jnp.abs(out - ref))
    assert jnp.allclose(out, ref, atol=2e-3, rtol=2e-3), f"max err {err}"

    print("KERNEL_OK")
</pallas_src>

<mosaic_0001>
module attributes {stable_mosaic.version = 11 : i64} {
  func.func @crate_encode_kernel(%arg0: i32, %arg1: memref<16x32xf32, #tpu.memory_space<vmem>>, %arg2: memref<104x32xf32, #tpu.memory_space<vmem>>, %arg3: memref<16x32xf32, #tpu.memory_space<vmem>>, %arg4: memref<16x32xf32, #tpu.memory_space<vmem>>) attributes {dimension_semantics = [#tpu.dimension_semantics<arbitrary>], iteration_bounds = array<i64: 1>, scalar_prefetch = 0 : i64, scratch_operands = 1 : i64, tpu.core_type = #tpu.core_type<tc>, window_params = [{pipeline_mode = #tpu.pipeline_mode<synchronous>, transform_indices = @transform_0, window_bounds = array<i64: 16, 32>}, {pipeline_mode = #tpu.pipeline_mode<synchronous>, transform_indices = @transform_1, window_bounds = array<i64: 104, 32>}, {pipeline_mode = #tpu.pipeline_mode<synchronous>, transform_indices = @transform_2, window_bounds = array<i64: 16, 32>}]} {
    %c0 = arith.constant 0 : index
    %c0_0 = arith.constant 0 : index
    %0 = vector.load %arg2[%c0, %c0_0] : memref<104x32xf32, #tpu.memory_space<vmem>>, vector<32x32xf32>
    %c32 = arith.constant 32 : index
    %c0_1 = arith.constant 0 : index
    %1 = vector.load %arg2[%c32, %c0_1] : memref<104x32xf32, #tpu.memory_space<vmem>>, vector<32x32xf32>
    %c64 = arith.constant 64 : index
    %c0_2 = arith.constant 0 : index
    %2 = vector.load %arg2[%c64, %c0_2] : memref<104x32xf32, #tpu.memory_space<vmem>>, vector<32x32xf32>
    %c96 = arith.constant 96 : index
    %c0_3 = arith.constant 0 : index
    %3 = vector.load %arg2[%c96, %c0_3] : memref<104x32xf32, #tpu.memory_space<vmem>>, vector<1x32xf32>
    %c97 = arith.constant 97 : index
    %c0_4 = arith.constant 0 : index
    %4 = vector.load %arg2[%c97, %c0_4] : memref<104x32xf32, #tpu.memory_space<vmem>>, vector<1x32xf32>
    %c98 = arith.constant 98 : index
    %c0_5 = arith.constant 0 : index
    %5 = vector.load %arg2[%c98, %c0_5] : memref<104x32xf32, #tpu.memory_space<vmem>>, vector<1x32xf32>
    %c99 = arith.constant 99 : index
    %c0_6 = arith.constant 0 : index
    %6 = vector.load %arg2[%c99, %c0_6] : memref<104x32xf32, #tpu.memory_space<vmem>>, vector<1x32xf32>
    %c0_7 = arith.constant 0 : index
    %c0_8 = arith.constant 0 : index
    %7 = vector.load %arg1[%c0_7, %c0_8] : memref<16x32xf32, #tpu.memory_space<vmem>>, vector<16x32xf32>
    %cst = arith.constant dense<0.000000e+00> : vector<16xf32>
    %8 = vector.multi_reduction <add>, %7, %cst [1] : vector<16x32xf32> to vector<16xf32>
    %9 = vector.shape_cast %8 : vector<16xf32> to vector<16x1xf32>
    %cst_9 = arith.constant 3.200000e+01 : f32
    %10 = vector.broadcast %cst_9 : f32 to vector<16x1xf32>
    %11 = arith.divf %9, %10 : vector<16x1xf32>
    %12 = vector.broadcast %11 : vector<16x1xf32> to vector<16x32xf32>
    %13 = arith.subf %7, %12 : vector<16x32xf32>
    %14 = arith.mulf %13, %13 : vector<16x32xf32>
    %cst_10 = arith.constant dense<0.000000e+00> : vector<16xf32>
    %15 = vector.multi_reduction <add>, %14, %cst_10 [1] : vector<16x32xf32> to vector<16xf32>
    %16 = vector.shape_cast %15 : vector<16xf32> to vector<16x1xf32>
    %cst_11 = arith.constant 3.200000e+01 : f32
    %17 = vector.broadcast %cst_11 : f32 to vector<16x1xf32>
    %18 = arith.divf %16, %17 : vector<16x1xf32>
    %19 = vector.broadcast %11 : vector<16x1xf32> to vector<16x32xf32>
    %20 = arith.subf %7, %19 : vector<16x32xf32>
    %cst_12 = arith.constant 9.99999974E-6 : f32
    %21 = vector.broadcast %cst_12 : f32 to vector<16x1xf32>
    %22 = arith.addf %18, %21 : vector<16x1xf32>
    %23 = math.rsqrt %22 : vector<16x1xf32>
    %24 = vector.broadcast %23 : vector<16x1xf32> to vector<16x32xf32>
    %25 = arith.mulf %20, %24 : vector<16x32xf32>
    %26 = vector.broadcast %3 : vector<1x32xf32> to vector<16x32xf32>
    %27 = arith.mulf %25, %26 : vector<16x32xf32>
    %28 = vector.broadcast %4 : vector<1x32xf32> to vector<16x32xf32>
    %29 = arith.addf %27, %28 : vector<16x32xf32>
    %cst_13 = arith.constant dense<0.000000e+00> : vector<16x32xf32>
    %30 = tpu.matmul %29, %0, %cst_13 {dimension_numbers = #tpu.dot_dimension_numbers<[1], [0], [0], [1], [0, 0, 1, 1], [], []>} : vector<16x32xf32>, vector<32x32xf32>, vector<16x32xf32> -> vector<16x32xf32>
    %c0_14 = arith.constant 0 : index
    %c0_15 = arith.constant 0 : index
    %31 = vector.load %arg4[%c0_14, %c0_15] : memref<16x32xf32, #tpu.memory_space<vmem>>, vector<16x32xf32>
    tpu.vector_store %arg4[%c0_14, %c0_15], %30 {strides = array<i32>} : memref<16x32xf32, #tpu.memory_space<vmem>>, vector<16x32xf32>,
    %c0_16 = arith.constant 0 : index
    %c0_17 = arith.constant 0 : index
    %32 = vector.load %arg4[%c0_16, %c0_17] : memref<16x32xf32, #tpu.memory_space<vmem>>, vector<16x8xf32>
    %33 = vector.shape_cast %32 : vector<16x8xf32> to vector<2x8x8xf32>
    %c0_18 = arith.constant 0 : index
    %c8 = arith.constant 8 : index
    %34 = vector.load %arg4[%c0_18, %c8] : memref<16x32xf32, #tpu.memory_space<vmem>>, vector<16x8xf32>
    %35 = vector.shape_cast %34 : vector<16x8xf32> to vector<2x8x8xf32>
    %c0_19 = arith.constant 0 : index
    %c16 = arith.constant 16 : index
    %36 = vector.load %arg4[%c0_19, %c16] : memref<16x32xf32, #tpu.memory_space<vmem>>, vector<16x8xf32>
    %37 = vector.shape_cast %36 : vector<16x8xf32> to vector<2x8x8xf32>
    %c0_20 = arith.constant 0 : index
    %c24 = arith.constant 24 : index
    %38 = vector.load %arg4[%c0_20, %c24] : memref<16x32xf32, #tpu.memory_space<vmem>>, vector<16x8xf32>
    %39 = vector.shape_cast %38 : vector<16x8xf32> to vector<2x8x8xf32>
    %40 = tpu.concatenate %33, %35, %37, %39 in 0 : vector<2x8x8xf32>, vector<2x8x8xf32>, vector<2x8x8xf32>, vector<2x8x8xf32> -> vector<8x8x8xf32>
    "tpu.trace_start"() <{level = 10 : i32, message = "gnd,gmd->gnm"}> : () -> ()
    %cst_21 = arith.constant dense<0.000000e+00> : vector<8x8x8xf32>
    %41 = tpu.matmul %40, %40, %cst_21 {dimension_numbers = #tpu.dot_dimension_numbers<[2], [2], [1], [1], [0, 0, 0, 1, 1, 1], [0], [0]>} : vector<8x8x8xf32>, vector<8x8x8xf32>, vector<8x8x8xf32> -> vector<8x8x8xf32>
    "tpu.trace_stop"() : () -> ()
    %cst_22 = arith.constant 0.353553385 : f32
    %42 = vector.broadcast %cst_22 : f32 to vector<8x8x8xf32>
    %43 = arith.mulf %41, %42 : vector<8x8x8xf32>
    %cst_23 = arith.constant dense<0xFF800000> : vector<8x8xf32>
    %44 = vector.multi_reduction <maximumf>, %43, %cst_23 [2] : vector<8x8x8xf32> to vector<8x8xf32>
    %45 = vector.shape_cast %44 : vector<8x8xf32> to vector<8x8x1xf32>
    %46 = vector.broadcast %45 : vector<8x8x1xf32> to vector<8x8x8xf32>
    %47 = arith.subf %43, %46 : vector<8x8x8xf32>
    %48 = math.exp %47 : vector<8x8x8xf32>
    %cst_24 = arith.constant dense<0.000000e+00> : vector<8x8xf32>
    %49 = vector.multi_reduction <add>, %48, %cst_24 [2] : vector<8x8x8xf32> to vector<8x8xf32>
    %50 = vector.shape_cast %49 : vector<8x8xf32> to vector<8x8x1xf32>
    %51 = tpu.reciprocal %50 {approx = true} : vector<8x8x1xf32> -> vector<8x8x1xf32>
    %52 = vector.broadcast %51 : vector<8x8x1xf32> to vector<8x8x8xf32>
    %53 = arith.mulf %48, %52 : vector<8x8x8xf32>
    "tpu.trace_start"() <{level = 10 : i32, message = "gnm,gmd->gnd"}> : () -> ()
    %cst_25 = arith.constant dense<0.000000e+00> : vector<8x8x8xf32>
    %54 = tpu.matmul %53, %40, %cst_25 {dimension_numbers = #tpu.dot_dimension_numbers<[2], [1], [1], [2], [0, 0, 0, 1, 1, 2], [0], [0]>} : vector<8x8x8xf32>, vector<8x8x8xf32>, vector<8x8x8xf32> -> vector<8x8x8xf32>
    "tpu.trace_stop"() : () -> ()
    %55 = vector.extract_strided_slice %54 {offsets = [0, 0, 0], sizes = [2, 8, 8], strides = [1, 1, 1]} : vector<8x8x8xf32> to vector<2x8x8xf32>
    %56 = vector.shape_cast %55 : vector<2x8x8xf32> to vector<16x8xf32>
    %c0_26 = arith.constant 0 : index
    %c0_27 = arith.constant 0 : index
    %57 = vector.load %arg4[%c0_26, %c0_27] : memref<16x32xf32, #tpu.memory_space<vmem>>, vector<16x8xf32>
    tpu.vector_store %arg4[%c0_26, %c0_27], %56 {strides = array<i32>} : memref<16x32xf32, #tpu.memory_space<vmem>>, vector<16x8xf32>,
    %58 = vector.extract_strided_slice %54 {offsets = [2, 0, 0], sizes = [2, 8, 8], strides = [1, 1, 1]} : vector<8x8x8xf32> to vector<2x8x8xf32>
    %59 = vector.shape_cast %58 : vector<2x8x8xf32> to vector<16x8xf32>
    %c0_28 = arith.constant 0 : index
    %c8_29 = arith.constant 8 : index
    %60 = vector.load %arg4[%c0_28, %c8_29] : memref<16x32xf32, #tpu.memory_space<vmem>>, vector<16x8xf32>
    tpu.vector_store %arg4[%c0_28, %c8_29], %59 {strides = array<i32>} : memref<16x32xf32, #tpu.memory_space<vmem>>, vector<16x8xf32>,
    %61 = vector.extract_strided_slice %54 {offsets = [4, 0, 0], sizes = [2, 8, 8], strides = [1, 1, 1]} : vector<8x8x8xf32> to vector<2x8x8xf32>
    %62 = vector.shape_cast %61 : vector<2x8x8xf32> to vector<16x8xf32>
    %c0_30 = arith.constant 0 : index
    %c16_31 = arith.constant 16 : index
    %63 = vector.load %arg4[%c0_30, %c16_31] : memref<16x32xf32, #tpu.memory_space<vmem>>, vector<16x8xf32>
    tpu.vector_store %arg4[%c0_30, %c16_31], %62 {strides = array<i32>} : memref<16x32xf32, #tpu.memory_space<vmem>>, vector<16x8xf32>,
    %64 = vector.extract_strided_slice %54 {offsets = [6, 0, 0], sizes = [2, 8, 8], strides = [1, 1, 1]} : vector<8x8x8xf32> to vector<2x8x8xf32>
    %65 = vector.shape_cast %64 : vector<2x8x8xf32> to vector<16x8xf32>
    %c0_32 = arith.constant 0 : index
    %c24_33 = arith.constant 24 : index
    %66 = vector.load %arg4[%c0_32, %c24_33] : memref<16x32xf32, #tpu.memory_space<vmem>>, vector<16x8xf32>
    tpu.vector_store %arg4[%c0_32, %c24_33], %65 {strides = array<i32>} : memref<16x32xf32, #tpu.memory_space<vmem>>, vector<16x8xf32>,
    %c0_34 = arith.constant 0 : index
    %c0_35 = arith.constant 0 : index
    %67 = vector.load %arg4[%c0_34, %c0_35] : memref<16x32xf32, #tpu.memory_space<vmem>>, vector<16x32xf32>
    %cst_36 = arith.constant dense<0.000000e+00> : vector<16x32xf32>
    %68 = tpu.matmul %67, %1, %cst_36 {dimension_numbers = #tpu.dot_dimension_numbers<[1], [0], [0], [1], [0, 0, 1, 1], [], []>} : vector<16x32xf32>, vector<32x32xf32>, vector<16x32xf32> -> vector<16x32xf32>
    %cst_37 = arith.constant 2.500000e-01 : f32
    %69 = vector.broadcast %cst_37 : f32 to vector<16x32xf32>
    %70 = arith.mulf %69, %68 : vector<16x32xf32>
    %71 = arith.addf %29, %70 : vector<16x32xf32>
    %cst_38 = arith.constant 8.000000e-01 : f32
    %72 = vector.broadcast %cst_38 : f32 to vector<16x32xf32>
    %73 = arith.mulf %71, %72 : vector<16x32xf32>
    %cst_39 = arith.constant dense<0.000000e+00> : vector<16xf32>
    %74 = vector.multi_reduction <add>, %73, %cst_39 [1] : vector<16x32xf32> to vector<16xf32>
    %75 = vector.shape_cast %74 : vector<16xf32> to vector<16x1xf32>
    %cst_40 = arith.constant 3.200000e+01 : f32
    %76 = vector.broadcast %cst_40 : f32 to vector<16x1xf32>
    %77 = arith.divf %75, %76 : vector<16x1xf32>
    %78 = vector.broadcast %77 : vector<16x1xf32> to vector<16x32xf32>
    %79 = arith.subf %73, %78 : vector<16x32xf32>
    %80 = arith.mulf %79, %79 : vector<16x32xf32>
    %cst_41 = arith.constant dense<0.000000e+00> : vector<16xf32>
    %81 = vector.multi_reduction <add>, %80, %cst_41 [1] : vector<16x32xf32> to vector<16xf32>
    %82 = vector.shape_cast %81 : vector<16xf32> to vector<16x1xf32>
    %cst_42 = arith.constant 3.200000e+01 : f32
    %83 = vector.broadcast %cst_42 : f32 to vector<16x1xf32>
    %84 = arith.divf %82, %83 : vector<16x1xf32>
    %85 = vector.broadcast %77 : vector<16x1xf32> to vector<16x32xf32>
    %86 = arith.subf %73, %85 : vector<16x32xf32>
    %cst_43 = arith.constant 9.99999974E-6 : f32
    %87 = vector.broadcast %cst_43 : f32 to vector<16x1xf32>
    %88 = arith.addf %84, %87 : vector<16x1xf32>
    %89 = math.rsqrt %88 : vector<16x1xf32>
    %90 = vector.broadcast %89 : vector<16x1xf32> to vector<16x32xf32>
    %91 = arith.mulf %86, %90 : vector<16x32xf32>
    %92 = vector.broadcast %5 : vector<1x32xf32> to vector<16x32xf32>
    %93 = arith.mulf %91, %92 : vector<16x32xf32>
    %94 = vector.broadcast %6 : vector<1x32xf32> to vector<16x32xf32>
    %95 = arith.addf %93, %94 : vector<16x32xf32>
    %cst_44 = arith.constant dense<0.000000e+00> : vector<16x32xf32>
    %96 = tpu.matmul %95, %2, %cst_44 {dimension_numbers = #tpu.dot_dimension_numbers<[1], [0], [0], [1], [0, 0, 1, 1], [], []>} : vector<16x32xf32>, vector<32x32xf32>, vector<16x32xf32> -> vector<16x32xf32>
    %cst_45 = arith.constant 2.500000e-01 : f32
    %97 = vector.broadcast %cst_45 : f32 to vector<16x32xf32>
    %98 = arith.mulf %97, %96 : vector<16x32xf32>
    %99 = arith.addf %95, %98 : vector<16x32xf32>
    %100 = math.absf %99 : vector<16x32xf32>
    %cst_46 = arith.constant 1.250000e-02 : f32
    %101 = vector.broadcast %cst_46 : f32 to vector<16x32xf32>
    %102 = arith.subf %100, %101 : vector<16x32xf32>
    %cst_47 = arith.constant 0.000000e+00 : f32
    %103 = vector.broadcast %cst_47 : f32 to vector<16x32xf32>
    %104 = arith.maximumf %102, %103 : vector<16x32xf32>
    %c0_48 = arith.constant 0 : index
    %c0_49 = arith.constant 0 : index
    %105 = vector.load %arg3[%c0_48, %c0_49] : memref<16x32xf32, #tpu.memory_space<vmem>>, vector<16x32xf32>
    tpu.vector_store %arg3[%c0_48, %c0_49], %104 {strides = array<i32>} : memref<16x32xf32, #tpu.memory_space<vmem>>, vector<16x32xf32>,
    return
  }
  func.func @transform_0(%arg0: i32) -> (i32, i32) {
    %c0_i32 = arith.constant 0 : i32
    %c0_i32_0 = arith.constant 0 : i32
    %c0_i32_1 = arith.constant 0 : i32
    return %c0_i32, %c0_i32_0 : i32, i32
  }
  func.func @transform_1(%arg0: i32) -> (i32, i32) {
    %c0_i32 = arith.constant 0 : i32
    %c0_i32_0 = arith.constant 0 : i32
    %c0_i32_1 = arith.constant 0 : i32
    return %c0_i32, %c0_i32_0 : i32, i32
  }
  func.func @transform_2(%arg0: i32) -> (i32, i32) {
    %c0_i32 = arith.constant 0 : i32
    %c0_i32_0 = arith.constant 0 : i32
    %c0_i32_1 = arith.constant 0 : i32
    return %c0_i32, %c0_i32_0 : i32, i32
  }
}

</mosaic_0001>

<llo_original>
// kernel: tpu_custom_call.1
$region0: #{tpu_custom_call.1}
  #allocation0 [shape = 'u32[]', space=smem, size = 0x4, offset = 0x4, fixed_abs, tag = 'smem constant byte address 0x4 - core index']
  #allocation1 [shape = 'u32[72,128]{1,0:T(1,128)}', space=vmem, size = 0x9000, scoped, tag = 'internal scratch']
  #allocation2 [shape = 'f32[16,32]{1,0:T(8,128)}', space=vmem, size = 0x2000, scoped, tag = 'scratch operand']
  %s0 = inlined_call_operand.vmem [shape: f32[16,32], index: 0, kind: input, shape index: {}]
  %s1 = inlined_call_operand.vmem [shape: f32[104,32], index: 1, kind: input, shape index: {}]
  %s2 = inlined_call_operand.hbm [shape: f32[16,32], index: 2, kind: output, shape index: {}]
  %s3 = sld [smem:[#allocation0]]
  $region18: #{tpu_custom_call.1} parent=0
    _
  %s5 = ssub.s32 1, %s3
  %s6 = scalar_select 0, %s5, %s3
  $region1: #{tpu_custom_call.1} parent=0
    #allocation3 [shape = 'u8[8192]{0}', space=vmem, size = 0x2000, scoped, tag = 'output window, operand 0, single buffered']
    #allocation4 [shape = 's32[1]{0}', space=sflag, size = 0x4, scoped, tag = 'scoped memory for tpu_custom_call.1']
    %7 = vsyncpa [#allocation4], 0
    // Predicated region
    $region2: #{tpu_custom_call.1} parent=1 // pred_check
      _
    $region3: #{tpu_custom_call.1} parent=1 // pred_check_branch
      %9 = sbr.rel (0) target = $region5
    $region4: #{tpu_custom_call.1} parent=1 // pred_region
      _
    $region5: #{tpu_custom_call.1} parent=1 // pred_fallthru
      _
    // Predicated region
    $region6: #{tpu_custom_call.1} parent=1 // pred_check
      _
    $region7: #{tpu_custom_call.1} parent=1 // pred_check_branch
      %11 = sbr.rel (0) target = $region9
    $region8: #{tpu_custom_call.1} parent=1 // pred_region
      _
    $region9: #{tpu_custom_call.1} parent=1 // pred_fallthru
      _
    %v12 = vld [vmem:[%s1] sm:$0xff]
    %v13 = vld [vmem:[%s1 + $0x8] sm:$0xff]
    %v14 = vld [vmem:[%s1 + $0x10] sm:$0xff]
    %v15 = vld [vmem:[%s1 + $0x18] sm:$0xff]
    %v16 = vld [vmem:[%s1 + $0x20] sm:$0xff]
    %v17 = vld [vmem:[%s1 + $0x28] sm:$0xff]
    %v18 = vld [vmem:[%s1 + $0x30] sm:$0xff]
    %v19 = vld [vmem:[%s1 + $0x38] sm:$0xff]
    %v20 = vld [vmem:[%s1 + $0x40] sm:$0xff]
    %v21 = vld [vmem:[%s1 + $0x48] sm:$0xff]
    %v22 = vld [vmem:[%s1 + $0x50] sm:$0xff]
    %v23 = vld [vmem:[%s1 + $0x58] sm:$0xff]
    %v24 = vld [vmem:[%s1 + $0x60] sm:$0x1]
    %v25 = vld [vmem:[%s1 + $0x61] sm:$0x1]
    %v26 = vld [vmem:[%s1 + $0x62] sm:$0x1]
    %v27 = vld [vmem:[%s1 + $0x63] sm:$0x1]
    %v28 = vld [vmem:[%s0] sm:$0xff]
    %v29 = vld [vmem:[%s0 + $0x8] sm:$0xff]
    %vm30 = vcmask 261120
    %v31 = vsel %vm30, %v28, 0.0
    %32 = vadd.xlane.f32.xlu0 %v31
    %v33 = vpop.xlane.xlu0 %32
    %v34 = vsel %vm30, %v29, 0.0
    %35 = vadd.xlane.f32.xlu0 %v34
    %v36 = vpop.xlane.xlu0 %35
    %v37 = vrcp.pop 32.0
    %v38 = vmul.f32 32.0, %v37
    %v39 = vsub.f32 1.0, %v38
    %v40 = vmul.f32 %v37, %v39
    %v41 = vadd.f32 %v37, %v40
    %vm42 = vweird.f32 %v37
    %v43 = vsel %vm42, %v37, %v41
    %v44 = vmul.f32 %v33, %v43
    %v45 = vmul.f32 %v36, %v43
    %v46 = vsub.f32 %v28, %v44
    %v47 = vsub.f32 %v29, %v45
    %v48 = vmul.f32 %v46, %v46
    %v49 = vmul.f32 %v47, %v47
    %v50 = vsel %vm30, %v48, 0.0
    %51 = vadd.xlane.f32.xlu0 %v50
    %v52 = vpop.xlane.xlu0 %51
    %v53 = vsel %vm30, %v49, 0.0
    %54 = vadd.xlane.f32.xlu0 %v53
    %v55 = vpop.xlane.xlu0 %54
    %v56 = vmul.f32 %v52, %v43
    %v57 = vmul.f32 %v55, %v43
    %v58 = vadd.f32 %v56, 1e-05
    %v59 = vadd.f32 %v57, 1e-05
    %v60 = vrsqrt.pop %v58
    %v61 = vmul.f32 %v60, %v58
    %v62 = vmul.f32 %v61, %v60
    %v63 = vmul.f32 0.5, %v62
    %v64 = vsub.f32 1.5, %v63
    %v65 = vmul.f32 %v60, %v64
    %vm66 = vweird.f32 %v58
    %vm67 = vweird.f32 %v60
    %vm68 = vmor %vm66, %vm67
    %v69 = vsel %vm68, %v60, %v65
    %v70 = vrsqrt.pop %v59
    %v71 = vmul.f32 %v70, %v59
    %v72 = vmul.f32 %v71, %v70
    %v73 = vmul.f32 0.5, %v72
    %v74 = vsub.f32 1.5, %v73
    %v75 = vmul.f32 %v70, %v74
    %vm76 = vweird.f32 %v59
    %vm77 = vweird.f32 %v70
    %vm78 = vmor %vm76, %vm77
    %v79 = vsel %vm78, %v70, %v75
    %v80 = vmul.f32 %v46, %v69
    %v81 = vmul.f32 %v47, %v79
    %v82 = vperm.slane %v24, 0
    %v83 = vmul.f32 %v80, %v82
    %v84 = vmul.f32 %v81, %v82
    %v85 = vperm.slane %v25, 0
    %v86 = vadd.f32 %v83, %v85
    %v87 = vadd.f32 %v84, %v85
    %v89 = vsel %vm30, %v86, 0
    %v92 = vsel %vm30, %v87, 0
    %94 = vmatpush.msra.mxu0 0.0
    %95 = vmatpush.msra.mxu0 0.0
    %96 = vmatpush.msra.mxu0 0.0
    %97 = vmatpush.msra.mxu0 0.0
    %98 = vmatpush.msra.mxu0 0.0
    %99 = vmatpush.msra.mxu0 0.0
    %100 = vmatpush.msra.mxu0 0.0
    %101 = vmatpush.msra.mxu0 0.0
    %102 = vmatpush.msra.mxu0 0.0
    %103 = vmatpush.msra.mxu0 0.0
    %104 = vmatpush.msra.mxu0 0.0
    %105 = vmatpush.msra.mxu0 0.0
    %106 = vmatpush.msra.mxu0 %v15
    %107 = vmatpush.msra.mxu0 %v14
    %108 = vmatpush.msra.mxu0 %v13
    %109 = vmatpush.msra.mxu0 %v12
    %110 = vmatmul.f32.gmra.mxu0 %v89
    %v111 = vpop.f32.mrf.mxu0
    %v112 = vadd.f32 0.0, %v111
    %113 = vmatmul.f32.gmra.mxu0 %v92
    %v114 = vpop.f32.mrf.mxu0
    %v115 = vadd.f32 0.0, %v114
    %116 = vdwg.mxu0
    %117 = vst.msk [vmem:[#allocation2] sm:$0xff] %vm30, %v112
    %118 = vst.msk [vmem:[#allocation2 + $0x8] sm:$0xff] %vm30, %v115
    %v119 = vld [vmem:[#allocation2] sm:$0xff]
    %v120 = vld [vmem:[#allocation2 + $0x8] sm:$0xff]
    %123 = vrot.lane.b32.xlu0 %v119, 120
    %v124 = vpop.permute.xlu0 %123
    %125 = vrot.lane.b32.xlu0 %v120, 120
    %v126 = vpop.permute.xlu0 %125
    %129 = vrot.lane.b32.xlu0 %v119, 112
    %v130 = vpop.permute.xlu0 %129
    %131 = vrot.lane.b32.xlu0 %v120, 112
    %v132 = vpop.permute.xlu0 %131
    %135 = vrot.lane.b32.xlu0 %v119, 104
    %v136 = vpop.permute.xlu0 %135
    %137 = vrot.lane.b32.xlu0 %v120, 104
    %v138 = vpop.permute.xlu0 %137
    %vm141 = vcmask 64512
    %v142 = vsel %vm141, %v119, 0
    %144 = vmatpush.xpose.msra.mxu0 0.0
    %145 = vmatpush.xpose.msra.mxu0 0.0
    %146 = vmatpush.xpose.msra.mxu0 0.0
    %147 = vmatpush.xpose.msra.mxu0 0.0
    %148 = vmatpush.xpose.msra.mxu0 0.0
    %149 = vmatpush.xpose.msra.mxu0 0.0
    %150 = vmatpush.xpose.msra.mxu0 0.0
    %151 = vmatpush.xpose.msra.mxu0 0.0
    %152 = vmatpush.xpose.msra.mxu0 0.0
    %153 = vmatpush.xpose.msra.mxu0 0.0
    %154 = vmatpush.xpose.msra.mxu0 0.0
    %155 = vmatpush.xpose.msra.mxu0 0.0
    %156 = vmatpush.xpose.msra.mxu0 0.0
    %157 = vmatpush.xpose.msra.mxu0 0.0
    %158 = vmatpush.xpose.msra.mxu0 0.0
    %159 = vmatpush.xpose.msra.mxu0 %v142
    %160 = vmatmul.f32.gmra.mxu0 %v142
    %v161 = vpop.f32.mrf.mxu0
    %v162 = vadd.f32 0.0, %v161
    %163 = vdwg.mxu0
    %v164 = vsel %vm141, %v120, 0
    %166 = vmatpush.xpose.msra.mxu0 0.0
    %167 = vmatpush.xpose.msra.mxu0 0.0
    %168 = vmatpush.xpose.msra.mxu0 0.0
    %169 = vmatpush.xpose.msra.mxu0 0.0
    %170 = vmatpush.xpose.msra.mxu0 0.0
    %171 = vmatpush.xpose.msra.mxu0 0.0
    %172 = vmatpush.xpose.msra.mxu0 0.0
    %173 = vmatpush.xpose.msra.mxu0 0.0
    %174 = vmatpush.xpose.msra.mxu0 0.0
    %175 = vmatpush.xpose.msra.mxu0 0.0
    %176 = vmatpush.xpose.msra.mxu0 0.0
    %177 = vmatpush.xpose.msra.mxu0 0.0
    %178 = vmatpush.xpose.msra.mxu0 0.0
    %179 = vmatpush.xpose.msra.mxu0 0.0
    %180 = vmatpush.xpose.msra.mxu0 0.0
    %181 = vmatpush.xpose.msra.mxu0 %v164
    %182 = vmatmul.f32.gmra.mxu0 %v164
    %v183 = vpop.f32.mrf.mxu0
    %v184 = vadd.f32 0.0, %v183
    %185 = vdwg.mxu0
    %v186 = vsel %vm141, %v124, 0
    %188 = vmatpush.xpose.msra.mxu0 0.0
    %189 = vmatpush.xpose.msra.mxu0 0.0
    %190 = vmatpush.xpose.msra.mxu0 0.0
    %191 = vmatpush.xpose.msra.mxu0 0.0
    %192 = vmatpush.xpose.msra.mxu0 0.0
    %193 = vmatpush.xpose.msra.mxu0 0.0
    %194 = vmatpush.xpose.msra.mxu0 0.0
    %195 = vmatpush.xpose.msra.mxu0 0.0
    %196 = vmatpush.xpose.msra.mxu0 0.0
    %197 = vmatpush.xpose.msra.mxu0 0.0
    %198 = vmatpush.xpose.msra.mxu0 0.0
    %199 = vmatpush.xpose.msra.mxu0 0.0
    %200 = vmatpush.xpose.msra.mxu0 0.0
    %201 = vmatpush.xpose.msra.mxu0 0.0
    %202 = vmatpush.xpose.msra.mxu0 0.0
    %203 = vmatpush.xpose.msra.mxu0 %v186
    %204 = vmatmul.f32.gmra.mxu0 %v186
    %v205 = vpop.f32.mrf.mxu0
    %v206 = vadd.f32 0.0, %v205
    %207 = vdwg.mxu0
    %v208 = vsel %vm141, %v126, 0
    %210 = vmatpush.xpose.msra.mxu0 0.0
    %211 = vmatpush.xpose.msra.mxu0 0.0
    %212 = vmatpush.xpose.msra.mxu0 0.0
    %213 = vmatpush.xpose.msra.mxu0 0.0
    %214 = vmatpush.xpose.msra.mxu0 0.0
    %215 = vmatpush.xpose.msra.mxu0 0.0
    %216 = vmatpush.xpose.msra.mxu0 0.0
    %217 = vmatpush.xpose.msra.mxu0 0.0
    %218 = vmatpush.xpose.msra.mxu0 0.0
    %219 = vmatpush.xpose.msra.mxu0 0.0
    %220 = vmatpush.xpose.msra.mxu0 0.0
    %221 = vmatpush.xpose.msra.mxu0 0.0
    %222 = vmatpush.xpose.msra.mxu0 0.0
    %223 = vmatpush.xpose.msra.mxu0 0.0
    %224 = vmatpush.xpose.msra.mxu0 0.0
    %225 = vmatpush.xpose.msra.mxu0 %v208
    %226 = vmatmul.f32.gmra.mxu0 %v208
    %v227 = vpop.f32.mrf.mxu0
    %v228 = vadd.f32 0.0, %v227
    %229 = vdwg.mxu0
    %v230 = vsel %vm141, %v130, 0
    %232 = vmatpush.xpose.msra.mxu0 0.0
    %233 = vmatpush.xpose.msra.mxu0 0.0
    %234 = vmatpush.xpose.msra.mxu0 0.0
    %235 = vmatpush.xpose.msra.mxu0 0.0
    %236 = vmatpush.xpose.msra.mxu0 0.0
    %237 = vmatpush.xpose.msra.mxu0 0.0
    %238 = vmatpush.xpose.msra.mxu0 0.0
    %239 = vmatpush.xpose.msra.mxu0 0.0
    %240 = vmatpush.xpose.msra.mxu0 0.0
    %241 = vmatpush.xpose.msra.mxu0 0.0
    %242 = vmatpush.xpose.msra.mxu0 0.0
    %243 = vmatpush.xpose.msra.mxu0 0.0
    %244 = vmatpush.xpose.msra.mxu0 0.0
    %245 = vmatpush.xpose.msra.mxu0 0.0
    %246 = vmatpush.xpose.msra.mxu0 0.0
    %247 = vmatpush.xpose.msra.mxu0 %v230
    %248 = vmatmul.f32.gmra.mxu0 %v230
    %v249 = vpop.f32.mrf.mxu0
    %v250 = vadd.f32 0.0, %v249
    %251 = vdwg.mxu0
    %v252 = vsel %vm141, %v132, 0
    %254 = vmatpush.xpose.msra.mxu0 0.0
    %255 = vmatpush.xpose.msra.mxu0 0.0
    %256 = vmatpush.xpose.msra.mxu0 0.0
    %257 = vmatpush.xpose.msra.mxu0 0.0
    %258 = vmatpush.xpose.msra.mxu0 0.0
    %259 = vmatpush.xpose.msra.mxu0 0.0
    %260 = vmatpush.xpose.msra.mxu0 0.0
    %261 = vmatpush.xpose.msra.mxu0 0.0
    %262 = vmatpush.xpose.msra.mxu0 0.0
    %263 = vmatpush.xpose.msra.mxu0 0.0
    %264 = vmatpush.xpose.msra.mxu0 0.0
    %265 = vmatpush.xpose.msra.mxu0 0.0
    %266 = vmatpush.xpose.msra.mxu0 0.0
    %267 = vmatpush.xpose.msra.mxu0 0.0
    %268 = vmatpush.xpose.msra.mxu0 0.0
    %269 = vmatpush.xpose.msra.mxu0 %v252
    %270 = vmatmul.f32.gmra.mxu0 %v252
    %v271 = vpop.f32.mrf.mxu0
    %v272 = vadd.f32 0.0, %v271
    %273 = vdwg.mxu0
    %v274 = vsel %vm141, %v136, 0
    %276 = vmatpush.xpose.msra.mxu0 0.0
    %277 = vmatpush.xpose.msra.mxu0 0.0
    %278 = vmatpush.xpose.msra.mxu0 0.0
    %279 = vmatpush.xpose.msra.mxu0 0.0
    %280 = vmatpush.xpose.msra.mxu0 0.0
    %281 = vmatpush.xpose.msra.mxu0 0.0
    %282 = vmatpush.xpose.msra.mxu0 0.0
    %283 = vmatpush.xpose.msra.mxu0 0.0
    %284 = vmatpush.xpose.msra.mxu0 0.0
    %285 = vmatpush.xpose.msra.mxu0 0.0
    %286 = vmatpush.xpose.msra.mxu0 0.0
    %287 = vmatpush.xpose.msra.mxu0 0.0
    %288 = vmatpush.xpose.msra.mxu0 0.0
    %289 = vmatpush.xpose.msra.mxu0 0.0
    %290 = vmatpush.xpose.msra.mxu0 0.0
    %291 = vmatpush.xpose.msra.mxu0 %v274
    %292 = vmatmul.f32.gmra.mxu0 %v274
    %v293 = vpop.f32.mrf.mxu0
    %v294 = vadd.f32 0.0, %v293
    %295 = vdwg.mxu0
    %v296 = vsel %vm141, %v138, 0
    %298 = vmatpush.xpose.msra.mxu0 0.0
    %299 = vmatpush.xpose.msra.mxu0 0.0
    %300 = vmatpush.xpose.msra.mxu0 0.0
    %301 = vmatpush.xpose.msra.mxu0 0.0
    %302 = vmatpush.xpose.msra.mxu0 0.0
    %303 = vmatpush.xpose.msra.mxu0 0.0
    %304 = vmatpush.xpose.msra.mxu0 0.0
    %305 = vmatpush.xpose.msra.mxu0 0.0
    %306 = vmatpush.xpose.msra.mxu0 0.0
    %307 = vmatpush.xpose.msra.mxu0 0.0
    %308 = vmatpush.xpose.msra.mxu0 0.0
    %309 = vmatpush.xpose.msra.mxu0 0.0
    %310 = vmatpush.xpose.msra.mxu0 0.0
    %311 = vmatpush.xpose.msra.mxu0 0.0
    %312 = vmatpush.xpose.msra.mxu0 0.0
    %313 = vmatpush.xpose.msra.mxu0 %v296
    %314 = vmatmul.f32.gmra.mxu0 %v296
    %v315 = vpop.f32.mrf.mxu0
    %v316 = vadd.f32 0.0, %v315
    %317 = vdwg.mxu0
    %v318 = vmul.f32 %v162, 0.35355338
    %v319 = vmul.f32 %v184, 0.35355338
    %v320 = vmul.f32 %v206, 0.35355338
    %v321 = vmul.f32 %v228, 0.35355338
    %v322 = vmul.f32 %v250, 0.35355338
    %v323 = vmul.f32 %v272, 0.35355338
    %v324 = vmul.f32 %v294, 0.35355338
    %v325 = vmul.f32 %v316, 0.35355338
    %v326 = vsel %vm141, %v318, -inf
    %327 = vmax.xlane.f32.xlu0 %v326
    %v328 = vpop.xlane.xlu0 %327
    %v329 = vsel %vm141, %v319, -inf
    %330 = vmax.xlane.f32.xlu0 %v329
    %v331 = vpop.xlane.xlu0 %330
    %v332 = vsel %vm141, %v320, -inf
    %333 = vmax.xlane.f32.xlu0 %v332
    %v334 = vpop.xlane.xlu0 %333
    %v335 = vsel %vm141, %v321, -inf
    %336 = vmax.xlane.f32.xlu0 %v335
    %v337 = vpop.xlane.xlu0 %336
    %v338 = vsel %vm141, %v322, -inf
    %339 = vmax.xlane.f32.xlu0 %v338
    %v340 = vpop.xlane.xlu0 %339
    %v341 = vsel %vm141, %v323, -inf
    %342 = vmax.xlane.f32.xlu0 %v341
    %v343 = vpop.xlane.xlu0 %342
    %v344 = vsel %vm141, %v324, -inf
    %345 = vmax.xlane.f32.xlu0 %v344
    %v346 = vpop.xlane.xlu0 %345
    %v347 = vsel %vm141, %v325, -inf
    %348 = vmax.xlane.f32.xlu0 %v347
    %v349 = vpop.xlane.xlu0 %348
    %v350 = vsub.f32 %v318, %v328
    %v351 = vsub.f32 %v319, %v331
    %v352 = vsub.f32 %v320, %v334
    %v353 = vsub.f32 %v321, %v337
    %v354 = vsub.f32 %v322, %v340
    %v355 = vsub.f32 %v323, %v343
    %v356 = vsub.f32 %v324, %v346
    %v357 = vsub.f32 %v325, %v349
    %v358 = vmul.f32 %v350, 1.442695
    %v359 = vpow.pop %v358
    %v360 = vmul.f32 %v351, 1.442695
    %v361 = vpow.pop %v360
    %v362 = vmul.f32 %v352, 1.442695
    %v363 = vpow.pop %v362
    %v364 = vmul.f32 %v353, 1.442695
    %v365 = vpow.pop %v364
    %v366 = vmul.f32 %v354, 1.442695
    %v367 = vpow.pop %v366
    %v368 = vmul.f32 %v355, 1.442695
    %v369 = vpow.pop %v368
    %v370 = vmul.f32 %v356, 1.442695
    %v371 = vpow.pop %v370
    %v372 = vmul.f32 %v357, 1.442695
    %v373 = vpow.pop %v372
    %v374 = vsel %vm141, %v359, 0.0
    %375 = vadd.xlane.f32.xlu0 %v374
    %v376 = vpop.xlane.xlu0 %375
    %v377 = vsel %vm141, %v361, 0.0
    %378 = vadd.xlane.f32.xlu0 %v377
    %v379 = vpop.xlane.xlu0 %378
    %v380 = vsel %vm141, %v363, 0.0
    %381 = vadd.xlane.f32.xlu0 %v380
    %v382 = vpop.xlane.xlu0 %381
    %v383 = vsel %vm141, %v365, 0.0
    %384 = vadd.xlane.f32.xlu0 %v383
    %v385 = vpop.xlane.xlu0 %384
    %v386 = vsel %vm141, %v367, 0.0
    %387 = vadd.xlane.f32.xlu0 %v386
    %v388 = vpop.xlane.xlu0 %387
    %v389 = vsel %vm141, %v369, 0.0
    %390 = vadd.xlane.f32.xlu0 %v389
    %v391 = vpop.xlane.xlu0 %390
    %v392 = vsel %vm141, %v371, 0.0
    %393 = vadd.xlane.f32.xlu0 %v392
    %v394 = vpop.xlane.xlu0 %393
    %v395 = vsel %vm141, %v373, 0.0
    %396 = vadd.xlane.f32.xlu0 %v395
    %v397 = vpop.xlane.xlu0 %396
    %v398 = vrcp.pop %v376
    %v399 = vrcp.pop %v379
    %v400 = vrcp.pop %v382
    %v401 = vrcp.pop %v385
    %v402 = vrcp.pop %v388
    %v403 = vrcp.pop %v391
    %v404 = vrcp.pop %v394
    %v405 = vrcp.pop %v397
    %v406 = vmul.f32 %v359, %v398
    %v407 = vmul.f32 %v361, %v399
    %v408 = vmul.f32 %v363, %v400
    %v409 = vmul.f32 %v365, %v401
    %v410 = vmul.f32 %v367, %v402
    %v411 = vmul.f32 %v369, %v403
    %v412 = vmul.f32 %v371, %v404
    %v413 = vmul.f32 %v373, %v405
    %v415 = vsel %vm141, %v406, 0
    %417 = vmatpush.msra.mxu0 0.0
    %418 = vmatpush.msra.mxu0 0.0
    %419 = vmatpush.msra.mxu0 0.0
    %420 = vmatpush.msra.mxu0 0.0
    %421 = vmatpush.msra.mxu0 0.0
    %422 = vmatpush.msra.mxu0 0.0
    %423 = vmatpush.msra.mxu0 0.0
    %424 = vmatpush.msra.mxu0 0.0
    %425 = vmatpush.msra.mxu0 0.0
    %426 = vmatpush.msra.mxu0 0.0
    %427 = vmatpush.msra.mxu0 0.0
    %428 = vmatpush.msra.mxu0 0.0
    %429 = vmatpush.msra.mxu0 0.0
    %430 = vmatpush.msra.mxu0 0.0
    %431 = vmatpush.msra.mxu0 0.0
    %432 = vmatpush.msra.mxu0 %v119
    %433 = vmatmul.f32.gmra.mxu0 %v415
    %v434 = vpop.f32.mrf.mxu0
    %v435 = vadd.f32 0.0, %v434
    %436 = vdwg.mxu0
    %v438 = vsel %vm141, %v407, 0
    %440 = vmatpush.msra.mxu0 0.0
    %441 = vmatpush.msra.mxu0 0.0
    %442 = vmatpush.msra.mxu0 0.0
    %443 = vmatpush.msra.mxu0 0.0
    %444 = vmatpush.msra.mxu0 0.0
    %445 = vmatpush.msra.mxu0 0.0
    %446 = vmatpush.msra.mxu0 0.0
    %447 = vmatpush.msra.mxu0 0.0
    %448 = vmatpush.msra.mxu0 0.0
    %449 = vmatpush.msra.mxu0 0.0
    %450 = vmatpush.msra.mxu0 0.0
    %451 = vmatpush.msra.mxu0 0.0
    %452 = vmatpush.msra.mxu0 0.0
    %453 = vmatpush.msra.mxu0 0.0
    %454 = vmatpush.msra.mxu0 0.0
    %455 = vmatpush.msra.mxu0 %v120
    %456 = vmatmul.f32.gmra.mxu0 %v438
    %v457 = vpop.f32.mrf.mxu0
    %v458 = vadd.f32 0.0, %v457
    %459 = vdwg.mxu0
    %v461 = vsel %vm141, %v408, 0
    %463 = vmatpush.msra.mxu0 0.0
    %464 = vmatpush.msra.mxu0 0.0
    %465 = vmatpush.msra.mxu0 0.0
    %466 = vmatpush.msra.mxu0 0.0
    %467 = vmatpush.msra.mxu0 0.0
    %468 = vmatpush.msra.mxu0 0.0
    %469 = vmatpush.msra.mxu0 0.0
    %470 = vmatpush.msra.mxu0 0.0
    %471 = vmatpush.msra.mxu0 0.0
    %472 = vmatpush.msra.mxu0 0.0
    %473 = vmatpush.msra.mxu0 0.0
    %474 = vmatpush.msra.mxu0 0.0
    %475 = vmatpush.msra.mxu0 0.0
    %476 = vmatpush.msra.mxu0 0.0
    %477 = vmatpush.msra.mxu0 0.0
    %478 = vmatpush.msra.mxu0 %v124
    %479 = vmatmul.f32.gmra.mxu0 %v461
    %v480 = vpop.f32.mrf.mxu0
    %v481 = vadd.f32 0.0, %v480
    %482 = vdwg.mxu0
    %v484 = vsel %vm141, %v409, 0
    %486 = vmatpush.msra.mxu0 0.0
    %487 = vmatpush.msra.mxu0 0.0
    %488 = vmatpush.msra.mxu0 0.0
    %489 = vmatpush.msra.mxu0 0.0
    %490 = vmatpush.msra.mxu0 0.0
    %491 = vmatpush.msra.mxu0 0.0
    %492 = vmatpush.msra.mxu0 0.0
    %493 = vmatpush.msra.mxu0 0.0
    %494 = vmatpush.msra.mxu0 0.0
    %495 = vmatpush.msra.mxu0 0.0
    %496 = vmatpush.msra.mxu0 0.0
    %497 = vmatpush.msra.mxu0 0.0
    %498 = vmatpush.msra.mxu0 0.0
    %499 = vmatpush.msra.mxu0 0.0
    %500 = vmatpush.msra.mxu0 0.0
    %501 = vmatpush.msra.mxu0 %v126
    %502 = vmatmul.f32.gmra.mxu0 %v484
    %v503 = vpop.f32.mrf.mxu0
    %v504 = vadd.f32 0.0, %v503
    %505 = vdwg.mxu0
    %v507 = vsel %vm141, %v410, 0
    %509 = vmatpush.msra.mxu0 0.0
    %510 = vmatpush.msra.mxu0 0.0
    %511 = vmatpush.msra.mxu0 0.0
    %512 = vmatpush.msra.mxu0 0.0
    %513 = vmatpush.msra.mxu0 0.0
    %514 = vmatpush.msra.mxu0 0.0
    %515 = vmatpush.msra.mxu0 0.0
    %516 = vmatpush.msra.mxu0 0.0
    %517 = vmatpush.msra.mxu0 0.0
    %518 = vmatpush.msra.mxu0 0.0
    %519 = vmatpush.msra.mxu0 0.0
    %520 = vmatpush.msra.mxu0 0.0
    %521 = vmatpush.msra.mxu0 0.0
    %522 = vmatpush.msra.mxu0 0.0
    %523 = vmatpush.msra.mxu0 0.0
    %524 = vmatpush.msra.mxu0 %v130
    %525 = vmatmul.f32.gmra.mxu0 %v507
    %v526 = vpop.f32.mrf.mxu0
    %v527 = vadd.f32 0.0, %v526
    %528 = vdwg.mxu0
    %v530 = vsel %vm141, %v411, 0
    %532 = vmatpush.msra.mxu0 0.0
    %533 = vmatpush.msra.mxu0 0.0
    %534 = vmatpush.msra.mxu0 0.0
    %535 = vmatpush.msra.mxu0 0.0
    %536 = vmatpush.msra.mxu0 0.0
    %537 = vmatpush.msra.mxu0 0.0
    %538 = vmatpush.msra.mxu0 0.0
    %539 = vmatpush.msra.mxu0 0.0
    %540 = vmatpush.msra.mxu0 0.0
    %541 = vmatpush.msra.mxu0 0.0
    %542 = vmatpush.msra.mxu0 0.0
    %543 = vmatpush.msra.mxu0 0.0
    %544 = vmatpush.msra.mxu0 0.0
    %545 = vmatpush.msra.mxu0 0.0
    %546 = vmatpush.msra.mxu0 0.0
    %547 = vmatpush.msra.mxu0 %v132
    %548 = vmatmul.f32.gmra.mxu0 %v530
    %v549 = vpop.f32.mrf.mxu0
    %v550 = vadd.f32 0.0, %v549
    %551 = vdwg.mxu0
    %v553 = vsel %vm141, %v412, 0
    %555 = vmatpush.msra.mxu0 0.0
    %556 = vmatpush.msra.mxu0 0.0
    %557 = vmatpush.msra.mxu0 0.0
    %558 = vmatpush.msra.mxu0 0.0
    %559 = vmatpush.msra.mxu0 0.0
    %560 = vmatpush.msra.mxu0 0.0
    %561 = vmatpush.msra.mxu0 0.0
    %562 = vmatpush.msra.mxu0 0.0
    %563 = vmatpush.msra.mxu0 0.0
    %564 = vmatpush.msra.mxu0 0.0
    %565 = vmatpush.msra.mxu0 0.0
    %566 = vmatpush.msra.mxu0 0.0
    %567 = vmatpush.msra.mxu0 0.0
    %568 = vmatpush.msra.mxu0 0.0
    %569 = vmatpush.msra.mxu0 0.0
    %570 = vmatpush.msra.mxu0 %v136
    %571 = vmatmul.f32.gmra.mxu0 %v553
    %v572 = vpop.f32.mrf.mxu0
    %v573 = vadd.f32 0.0, %v572
    %574 = vdwg.mxu0
    %v576 = vsel %vm141, %v413, 0
    %578 = vmatpush.msra.mxu0 0.0
    %579 = vmatpush.msra.mxu0 0.0
    %580 = vmatpush.msra.mxu0 0.0
    %581 = vmatpush.msra.mxu0 0.0
    %582 = vmatpush.msra.mxu0 0.0
    %583 = vmatpush.msra.mxu0 0.0
    %584 = vmatpush.msra.mxu0 0.0
    %585 = vmatpush.msra.mxu0 0.0
    %586 = vmatpush.msra.mxu0 0.0
    %587 = vmatpush.msra.mxu0 0.0
    %588 = vmatpush.msra.mxu0 0.0
    %589 = vmatpush.msra.mxu0 0.0
    %590 = vmatpush.msra.mxu0 0.0
    %591 = vmatpush.msra.mxu0 0.0
    %592 = vmatpush.msra.mxu0 0.0
    %593 = vmatpush.msra.mxu0 %v138
    %594 = vmatmul.f32.gmra.mxu0 %v576
    %v595 = vpop.f32.mrf.mxu0
    %v596 = vadd.f32 0.0, %v595
    %597 = vdwg.mxu0
    %598 = vst.msk [vmem:[#allocation2] sm:$0xff] %vm141, %v435
    %599 = vst.msk [vmem:[#allocation2 + $0x8] sm:$0xff] %vm141, %v458
    %602 = vrot.lane.b32.xlu0 %v481, 8
    %v603 = vpop.permute.xlu0 %602
    %604 = vrot.lane.b32.xlu0 %v504, 8
    %v605 = vpop.permute.xlu0 %604
    %vm608 = vcmask 130112
    %609 = vst.msk [vmem:[#allocation2] sm:$0xff] %vm608, %v603
    %610 = vst.msk [vmem:[#allocation2 + $0x8] sm:$0xff] %vm608, %v605
    %613 = vrot.lane.b32.xlu0 %v527, 16
    %v614 = vpop.permute.xlu0 %613
    %615 = vrot.lane.b32.xlu0 %v550, 16
    %v616 = vpop.permute.xlu0 %615
    %vm619 = vcmask 195712
    %620 = vst.msk [vmem:[#allocation2] sm:$0xff] %vm619, %v614
    %621 = vst.msk [vmem:[#allocation2 + $0x8] sm:$0xff] %vm619, %v616
    %624 = vrot.lane.b32.xlu0 %v573, 24
    %v625 = vpop.permute.xlu0 %624
    %626 = vrot.lane.b32.xlu0 %v596, 24
    %v627 = vpop.permute.xlu0 %626
    %vm630 = vcmask 261312
    %631 = vst.msk [vmem:[#allocation2] sm:$0xff] %vm630, %v625
    %632 = vst.msk [vmem:[#allocation2 + $0x8] sm:$0xff] %vm630, %v627
    %v633 = vld [vmem:[#allocation2] sm:$0xff]
    %v634 = vld [vmem:[#allocation2 + $0x8] sm:$0xff]
    %v636 = vsel %vm30, %v633, 0
    %v639 = vsel %vm30, %v634, 0
    %641 = vmatpush.msra.mxu0 0.0
    %642 = vmatpush.msra.mxu0 0.0
    %643 = vmatpush.msra.mxu0 0.0
    %644 = vmatpush.msra.mxu0 0.0
    %645 = vmatpush.msra.mxu0 0.0
    %646 = vmatpush.msra.mxu0 0.0
    %647 = vmatpush.msra.mxu0 0.0
    %648 = vmatpush.msra.mxu0 0.0
    %649 = vmatpush.msra.mxu0 0.0
    %650 = vmatpush.msra.mxu0 0.0
    %651 = vmatpush.msra.mxu0 0.0
    %652 = vmatpush.msra.mxu0 0.0
    %653 = vmatpush.msra.mxu0 %v19
    %654 = vmatpush.msra.mxu0 %v18
    %655 = vmatpush.msra.mxu0 %v17
    %656 = vmatpush.msra.mxu0 %v16
    %657 = vmatmul.f32.gmra.mxu0 %v636
    %v658 = vpop.f32.mrf.mxu0
    %v659 = vadd.f32 0.0, %v658
    %660 = vmatmul.f32.gmra.mxu0 %v639
    %v661 = vpop.f32.mrf.mxu0
    %v662 = vadd.f32 0.0, %v661
    %663 = vdwg.mxu0
    %v664 = vmul.f32 %v659, 0.25
    %v665 = vmul.f32 %v662, 0.25
    %v666 = vadd.f32 %v86, %v664
    %v667 = vadd.f32 %v87, %v665
    %v668 = vmul.f32 %v666, 0.8
    %v669 = vmul.f32 %v667, 0.8
    %v670 = vsel %vm30, %v668, 0.0
    %671 = vadd.xlane.f32.xlu0 %v670
    %v672 = vpop.xlane.xlu0 %671
    %v673 = vsel %vm30, %v669, 0.0
    %674 = vadd.xlane.f32.xlu0 %v673
    %v675 = vpop.xlane.xlu0 %674
    %v676 = vmul.f32 %v672, %v43
    %v677 = vmul.f32 %v675, %v43
    %v678 = vsub.f32 %v668, %v676
    %v679 = vsub.f32 %v669, %v677
    %v680 = vmul.f32 %v678, %v678
    %v681 = vmul.f32 %v679, %v679
    %v682 = vsel %vm30, %v680, 0.0
    %683 = vadd.xlane.f32.xlu0 %v682
    %v684 = vpop.xlane.xlu0 %683
    %v685 = vsel %vm30, %v681, 0.0
    %686 = vadd.xlane.f32.xlu0 %v685
    %v687 = vpop.xlane.xlu0 %686
    %v688 = vmul.f32 %v684, %v43
    %v689 = vmul.f32 %v687, %v43
    %v690 = vadd.f32 %v688, 1e-05
    %v691 = vadd.f32 %v689, 1e-05
    %v692 = vrsqrt.pop %v690
    %v693 = vmul.f32 %v692, %v690
    %v694 = vmul.f32 %v693, %v692
    %v695 = vmul.f32 0.5, %v694
    %v696 = vsub.f32 1.5, %v695
    %v697 = vmul.f32 %v692, %v696
    %vm698 = vweird.f32 %v690
    %vm699 = vweird.f32 %v692
    %vm700 = vmor %vm698, %vm699
    %v701 = vsel %vm700, %v692, %v697
    %v702 = vrsqrt.pop %v691
    %v703 = vmul.f32 %v702, %v691
    %v704 = vmul.f32 %v703, %v702
    %v705 = vmul.f32 0.5, %v704
    %v706 = vsub.f32 1.5, %v705
    %v707 = vmul.f32 %v702, %v706
    %vm708 = vweird.f32 %v691
    %vm709 = vweird.f32 %v702
    %vm710 = vmor %vm708, %vm709
    %v711 = vsel %vm710, %v702, %v707
    %v712 = vmul.f32 %v678, %v701
    %v713 = vmul.f32 %v679, %v711
    %v714 = vperm.slane %v26, 0
    %v715 = vmul.f32 %v712, %v714
    %v716 = vmul.f32 %v713, %v714
    %v717 = vperm.slane %v27, 0
    %v718 = vadd.f32 %v715, %v717
    %v719 = vadd.f32 %v716, %v717
    %v721 = vsel %vm30, %v718, 0
    %v724 = vsel %vm30, %v719, 0
    %726 = vmatpush.msra.mxu0 0.0
    %727 = vmatpush.msra.mxu0 0.0
    %728 = vmatpush.msra.mxu0 0.0
    %729 = vmatpush.msra.mxu0 0.0
    %730 = vmatpush.msra.mxu0 0.0
    %731 = vmatpush.msra.mxu0 0.0
    %732 = vmatpush.msra.mxu0 0.0
    %733 = vmatpush.msra.mxu0 0.0
    %734 = vmatpush.msra.mxu0 0.0
    %735 = vmatpush.msra.mxu0 0.0
    %736 = vmatpush.msra.mxu0 0.0
    %737 = vmatpush.msra.mxu0 0.0
    %738 = vmatpush.msra.mxu0 %v23
    %739 = vmatpush.msra.mxu0 %v22
    %740 = vmatpush.msra.mxu0 %v21
    %741 = vmatpush.msra.mxu0 %v20
    %742 = vmatmul.f32.gmra.mxu0 %v721
    %v743 = vpop.f32.mrf.mxu0
    %v744 = vadd.f32 0.0, %v743
    %745 = vmatmul.f32.gmra.mxu0 %v724
    %v746 = vpop.f32.mrf.mxu0
    %v747 = vadd.f32 0.0, %v746
    %748 = vdwg.mxu0
    %v749 = vmul.f32 %v744, 0.25
    %v750 = vmul.f32 %v747, 0.25
    %v751 = vadd.f32 %v718, %v749
    %v752 = vadd.f32 %v719, %v750
    %v753 = vand.u32 2147483647, %v751
    %v754 = vand.u32 2147483647, %v752
    %v755 = vsub.f32 %v753, 0.0125
    %v756 = vsub.f32 %v754, 0.0125
    %v757 = vmax.f32 %v755, 0.0
    %v758 = vmax.f32 %v756, 0.0
    %759 = vst.msk [vmem:[#allocation3] sm:$0xff] %vm30, %v757
    %760 = vst.msk [vmem:[#allocation3 + $0x8] sm:$0xff] %vm30, %v758
    // Predicated region
    $region10: #{tpu_custom_call.1} parent=1 // pred_check
      _
    $region11: #{tpu_custom_call.1} parent=1 // pred_check_branch
      %762 = sbr.rel (0) target = $region13
    $region12: #{tpu_custom_call.1} parent=1 // pred_region
      %764 = vsyncadd [#allocation4], 0
      %s765 = sshll.u32 [#allocation3], 4
      %s766 = int_to_ptr.vmem [resolvable:$true] %s765
      %s767 = sshll.u32 %s2, 4
      %s768 = int_to_ptr.hbm [resolvable:$true] %s767
      %773 = dma.vmem_to_hbm [thread:$0]  %s766, 256, %s768, [#allocation4], 128, 128, 8
    $region13: #{tpu_custom_call.1} parent=1 // pred_fallthru
      _
    // Predicated region
    $region14: #{tpu_custom_call.1} parent=1 // pred_check
      _
    $region15: #{tpu_custom_call.1} parent=1 // pred_check_branch
      %775 = sbr.rel (0) target = $region17
    $region16: #{tpu_custom_call.1} parent=1 // pred_region
      %777 = dma.done [#allocation4], 256
    $region17: #{tpu_custom_call.1} parent=1 // pred_fallthru
      _
    %778 = vsyncpa [#allocation4], 1

</llo_original>
